<compile_context>
chip_gen: v7x
topology: tpu7x:2x2x1
jax: 0.10.0
libtpu: 0.0.40
codegen_flags: <defaults>
</compile_context>

<pallas_src>
import jax
import jax.numpy as jnp
from jax import lax
from jax.experimental import pallas as pl
from jax.experimental.pallas import tpu as pltpu


def _contact_head_kernel(w_ref, b_ref, att_row_ref, att_col_ref, out_ref):
    """Per-(batch, row-tile) body.

    w_ref       : SMEM (n_feat, 2)         linear weight transposed to [in, out]
    b_ref       : SMEM (2,)                linear bias
    att_row_ref : VMEM (1, n_feat, TM, S)  rows [i*TM:(i+1)*TM, :] of each head map
    att_col_ref : VMEM (1, n_feat, S, TM)  cols [:, i*TM:(i+1)*TM] of each head map
    out_ref     : VMEM (1, 2, TM, S)       channel-first logits for this row tile
    """
    n_feat = att_row_ref.shape[1]
    tm = att_row_ref.shape[2]
    s = att_row_ref.shape[3]

    def step(h, carry):
        r0, r1, c0, c1 = carry
        a_r = att_row_ref[0, h].astype(jnp.float32)   # (TM, S)
        a_c = att_col_ref[0, h].astype(jnp.float32)   # (S, TM)
        w0 = w_ref[h, 0]
        w1 = w_ref[h, 1]
        return (r0 + a_r * w0, r1 + a_r * w1, c0 + a_c * w0, c1 + a_c * w1)

    carry = (jnp.zeros((tm, s), jnp.float32), jnp.zeros((tm, s), jnp.float32),
             jnp.zeros((s, tm), jnp.float32), jnp.zeros((s, tm), jnp.float32))
    if n_feat <= 8:
        # Tiny head count: full static unroll keeps the VPU saturated.
        for h in range(n_feat):
            carry = step(h, carry)
    else:
        # Many heads: visible loop with modest unroll avoids bundle bloat / vreg spills.
        carry = lax.fori_loop(0, n_feat, step, carry, unroll=4)
    r0, r1, c0, c1 = carry

    # Symmetrize AFTER the per-channel linear combine (commutes with transpose):
    # exactly 2 XLU transposes per tile. Bias is broadcast once per tile.
    out_ref[0, 0] = (b_ref[0] + 0.5 * (r0 + c0.T)).astype(out_ref.dtype)
    out_ref[0, 1] = (b_ref[1] + 0.5 * (r1 + c1.T)).astype(out_ref.dtype)


def _pick_row_tile(seq_len, n_feat, itemsize):
    """Largest row tile whose double-buffered slabs fit a ~40 MiB VMEM budget
    (safe on v7x's 64 MiB physical VMEM; generous on v5e/v6e's 128 MiB)."""
    budget = 40 * 1024 * 1024
    for tm in (1024, 512, 256, 128):   # multiples of 128: legal lane dim for the column slab
        if tm > seq_len or seq_len % tm != 0:
            continue
        need = (2 * 2 * n_feat * tm * seq_len * itemsize   # row + col slabs, double-buffered
                + 2 * 2 * tm * seq_len * 4)                # output tile, double-buffered
        if need <= budget:
            return tm
    # Small / awkward S: take the whole plane (block dims == array dims is always legal).
    # TODO(synk): for huge n_feat*S that still exceeds the budget, add a head grid axis
    # with an accumulator + pl.when init/finalize.
    return seq_len


def pairwise_contact_prediction(attention, weight, bias, probing_heads=None):
    """JAX/Pallas forward of PairwiseContactPredictionFromAttentionHead (targets=None).

    attention : (B, H, S, S) float32 or bfloat16
    weight    : (2, num_features)  -- PyTorch nn.Linear weight layout
    bias      : (2,)
    returns   : (B, S-2, S-2, 2) float32
    """
    B, H, S, S2 = attention.shape
    assert S == S2

    if probing_heads is None or list(probing_heads) == list(range(H)):
        att = attention                      # no extra HBM gather pass when all heads are probed
        n_feat = H
    else:
        # TODO(synk): fold head selection into the DMA via a scalar-prefetch index_map
        # instead of materializing a gathered copy in HBM.
        heads = list(probing_heads)
        att = jnp.take(attention, jnp.asarray(heads, jnp.int32), axis=1)
        n_feat = len(heads)
    assert weight.shape == (2, n_feat)

    w_t = jnp.asarray(weight, jnp.float32).T      # (n_feat, 2)
    b = jnp.asarray(bias, jnp.float32)            # (2,)

    tm = _pick_row_tile(S, n_feat, jnp.dtype(att.dtype).itemsize)
    grid = (B, S // tm)

    out = pl.pallas_call(
        _contact_head_kernel,
        out_shape=jax.ShapeDtypeStruct((B, 2, S, S), jnp.float32),
        grid=grid,
        in_specs=[
            pl.BlockSpec(memory_space=pltpu.MemorySpace.SMEM),                  # weight
            pl.BlockSpec(memory_space=pltpu.MemorySpace.SMEM),                  # bias
            pl.BlockSpec((1, n_feat, tm, S), lambda bi, ti: (bi, 0, ti, 0)),    # row slab
            pl.BlockSpec((1, n_feat, S, tm), lambda bi, ti: (bi, 0, 0, ti)),    # column slab
        ],
        out_specs=pl.BlockSpec((1, 2, tm, S), lambda bi, ti: (bi, 0, ti, 0)),
        compiler_params=pltpu.CompilerParams(
            dimension_semantics=("parallel", "parallel"),   # batch x row-tile; megacore on v7x
            vmem_limit_bytes=48 * 1024 * 1024,
        ),
    )(w_t, b, att, att)

    # Slice the boundary positions BEFORE the layout transpose (less HBM traffic),
    # then move channels last to match PyTorch's (B, S-2, S-2, 2).
    prediction = jnp.transpose(out[:, :, 1:-1, 1:-1], (0, 2, 3, 1))
    return prediction

    # TODO(synk): cross-entropy loss and precision_at_l5 metric (masked topk/gather)
    # from the targets-provided branch are not implemented.


if __name__ == "__main__":
    B, H, S = 2, 4, 8
    key = jax.random.PRNGKey(0)
    k1, k2, k3 = jax.random.split(key, 3)

    # Deterministic synthetic inputs / parameters (no checkpoint loading).
    attn_logits = jax.random.normal(k1, (B, H, S, S), jnp.float32)
    attention = jax.nn.softmax(attn_logits, axis=-1)           # attention-like maps
    weight = jax.random.normal(k2, (2, H), jnp.float32) * 0.1  # nn.Linear(H, 2).weight
    bias = jax.random.normal(k3, (2,), jnp.float32) * 0.1      # nn.Linear(H, 2).bias

    pred = pairwise_contact_prediction(attention, weight, bias)
    pred = jax.block_until_ready(pred)
    assert pred.shape == (B, S - 2, S - 2, 2), pred.shape

    # Pure-JAX reference of the same forward semantics.
    feats = jnp.transpose(attention, (0, 2, 3, 1))              # (B, S, S, H)
    feats = (feats + jnp.transpose(feats, (0, 2, 1, 3))) * 0.5  # symmetrize
    ref = feats @ weight.T + bias                               # (B, S, S, 2)
    ref = ref[:, 1:-1, 1:-1, :]
    assert jnp.allclose(pred, ref, atol=1e-5, rtol=1e-5)

    print("KERNEL_OK")
</pallas_src>

<mosaic_0001>
module attributes {stable_mosaic.version = 11 : i64} {
  func.func @_contact_head_kernel(%arg0: i32, %arg1: i32, %arg2: memref<4x2xf32, #tpu.memory_space<smem>>, %arg3: memref<2xf32, #tpu.memory_space<smem>>, %arg4: memref<1x4x8x8xf32, #tpu.memory_space<vmem>>, %arg5: memref<1x4x8x8xf32, #tpu.memory_space<vmem>>, %arg6: memref<1x2x8x8xf32, #tpu.memory_space<vmem>>) attributes {dimension_semantics = [#tpu.dimension_semantics<parallel>, #tpu.dimension_semantics<parallel>], iteration_bounds = array<i64: 2, 1>, scalar_prefetch = 0 : i64, scratch_operands = 0 : i64, tpu.core_type = #tpu.core_type<tc>, window_params = [{transform_indices = @transform_0, window_bounds = array<i64: 4, 2>}, {transform_indices = @transform_1, window_bounds = array<i64: 2>}, {transform_indices = @transform_2, window_bounds = array<i64: 1, 4, 8, 8>}, {transform_indices = @transform_3, window_bounds = array<i64: 1, 4, 8, 8>}, {transform_indices = @transform_4, window_bounds = array<i64: 1, 2, 8, 8>}]} {
    %cst = arith.constant 0.000000e+00 : f32
    %0 = vector.broadcast %cst : f32 to vector<8x8xf32>
    %cst_0 = arith.constant 0.000000e+00 : f32
    %1 = vector.broadcast %cst_0 : f32 to vector<8x8xf32>
    %cst_1 = arith.constant 0.000000e+00 : f32
    %2 = vector.broadcast %cst_1 : f32 to vector<8x8xf32>
    %cst_2 = arith.constant 0.000000e+00 : f32
    %3 = vector.broadcast %cst_2 : f32 to vector<8x8xf32>
    %c0 = arith.constant 0 : index
    %c0_3 = arith.constant 0 : index
    %c0_4 = arith.constant 0 : index
    %c0_5 = arith.constant 0 : index
    %4 = vector.load %arg4[%c0, %c0_3, %c0_4, %c0_5] : memref<1x4x8x8xf32, #tpu.memory_space<vmem>>, vector<1x1x8x8xf32>
    %5 = vector.shape_cast %4 : vector<1x1x8x8xf32> to vector<8x8xf32>
    %c0_6 = arith.constant 0 : index
    %c0_7 = arith.constant 0 : index
    %c0_8 = arith.constant 0 : index
    %c0_9 = arith.constant 0 : index
    %6 = vector.load %arg5[%c0_6, %c0_7, %c0_8, %c0_9] : memref<1x4x8x8xf32, #tpu.memory_space<vmem>>, vector<1x1x8x8xf32>
    %7 = vector.shape_cast %6 : vector<1x1x8x8xf32> to vector<8x8xf32>
    %c0_10 = arith.constant 0 : index
    %c0_11 = arith.constant 0 : index
    %8 = memref.load %arg2[%c0_10, %c0_11] : memref<4x2xf32, #tpu.memory_space<smem>>
    %c0_12 = arith.constant 0 : index
    %c1 = arith.constant 1 : index
    %9 = memref.load %arg2[%c0_12, %c1] : memref<4x2xf32, #tpu.memory_space<smem>>
    %10 = vector.broadcast %8 : f32 to vector<8x8xf32>
    %11 = arith.mulf %5, %10 : vector<8x8xf32>
    %12 = arith.addf %0, %11 : vector<8x8xf32>
    %13 = vector.broadcast %9 : f32 to vector<8x8xf32>
    %14 = arith.mulf %5, %13 : vector<8x8xf32>
    %15 = arith.addf %1, %14 : vector<8x8xf32>
    %16 = vector.broadcast %8 : f32 to vector<8x8xf32>
    %17 = arith.mulf %7, %16 : vector<8x8xf32>
    %18 = arith.addf %2, %17 : vector<8x8xf32>
    %19 = vector.broadcast %9 : f32 to vector<8x8xf32>
    %20 = arith.mulf %7, %19 : vector<8x8xf32>
    %21 = arith.addf %3, %20 : vector<8x8xf32>
    %c0_13 = arith.constant 0 : index
    %c1_14 = arith.constant 1 : index
    %c0_15 = arith.constant 0 : index
    %c0_16 = arith.constant 0 : index
    %22 = vector.load %arg4[%c0_13, %c1_14, %c0_15, %c0_16] : memref<1x4x8x8xf32, #tpu.memory_space<vmem>>, vector<1x1x8x8xf32>
    %23 = vector.shape_cast %22 : vector<1x1x8x8xf32> to vector<8x8xf32>
    %c0_17 = arith.constant 0 : index
    %c1_18 = arith.constant 1 : index
    %c0_19 = arith.constant 0 : index
    %c0_20 = arith.constant 0 : index
    %24 = vector.load %arg5[%c0_17, %c1_18, %c0_19, %c0_20] : memref<1x4x8x8xf32, #tpu.memory_space<vmem>>, vector<1x1x8x8xf32>
    %25 = vector.shape_cast %24 : vector<1x1x8x8xf32> to vector<8x8xf32>
    %c1_21 = arith.constant 1 : index
    %c0_22 = arith.constant 0 : index
    %26 = memref.load %arg2[%c1_21, %c0_22] : memref<4x2xf32, #tpu.memory_space<smem>>
    %c1_23 = arith.constant 1 : index
    %c1_24 = arith.constant 1 : index
    %27 = memref.load %arg2[%c1_23, %c1_24] : memref<4x2xf32, #tpu.memory_space<smem>>
    %28 = vector.broadcast %26 : f32 to vector<8x8xf32>
    %29 = arith.mulf %23, %28 : vector<8x8xf32>
    %30 = arith.addf %12, %29 : vector<8x8xf32>
    %31 = vector.broadcast %27 : f32 to vector<8x8xf32>
    %32 = arith.mulf %23, %31 : vector<8x8xf32>
    %33 = arith.addf %15, %32 : vector<8x8xf32>
    %34 = vector.broadcast %26 : f32 to vector<8x8xf32>
    %35 = arith.mulf %25, %34 : vector<8x8xf32>
    %36 = arith.addf %18, %35 : vector<8x8xf32>
    %37 = vector.broadcast %27 : f32 to vector<8x8xf32>
    %38 = arith.mulf %25, %37 : vector<8x8xf32>
    %39 = arith.addf %21, %38 : vector<8x8xf32>
    %c0_25 = arith.constant 0 : index
    %c2 = arith.constant 2 : index
    %c0_26 = arith.constant 0 : index
    %c0_27 = arith.constant 0 : index
    %40 = vector.load %arg4[%c0_25, %c2, %c0_26, %c0_27] : memref<1x4x8x8xf32, #tpu.memory_space<vmem>>, vector<1x1x8x8xf32>
    %41 = vector.shape_cast %40 : vector<1x1x8x8xf32> to vector<8x8xf32>
    %c0_28 = arith.constant 0 : index
    %c2_29 = arith.constant 2 : index
    %c0_30 = arith.constant 0 : index
    %c0_31 = arith.constant 0 : index
    %42 = vector.load %arg5[%c0_28, %c2_29, %c0_30, %c0_31] : memref<1x4x8x8xf32, #tpu.memory_space<vmem>>, vector<1x1x8x8xf32>
    %43 = vector.shape_cast %42 : vector<1x1x8x8xf32> to vector<8x8xf32>
    %c2_32 = arith.constant 2 : index
    %c0_33 = arith.constant 0 : index
    %44 = memref.load %arg2[%c2_32, %c0_33] : memref<4x2xf32, #tpu.memory_space<smem>>
    %c2_34 = arith.constant 2 : index
    %c1_35 = arith.constant 1 : index
    %45 = memref.load %arg2[%c2_34, %c1_35] : memref<4x2xf32, #tpu.memory_space<smem>>
    %46 = vector.broadcast %44 : f32 to vector<8x8xf32>
    %47 = arith.mulf %41, %46 : vector<8x8xf32>
    %48 = arith.addf %30, %47 : vector<8x8xf32>
    %49 = vector.broadcast %45 : f32 to vector<8x8xf32>
    %50 = arith.mulf %41, %49 : vector<8x8xf32>
    %51 = arith.addf %33, %50 : vector<8x8xf32>
    %52 = vector.broadcast %44 : f32 to vector<8x8xf32>
    %53 = arith.mulf %43, %52 : vector<8x8xf32>
    %54 = arith.addf %36, %53 : vector<8x8xf32>
    %55 = vector.broadcast %45 : f32 to vector<8x8xf32>
    %56 = arith.mulf %43, %55 : vector<8x8xf32>
    %57 = arith.addf %39, %56 : vector<8x8xf32>
    %c0_36 = arith.constant 0 : index
    %c3 = arith.constant 3 : index
    %c0_37 = arith.constant 0 : index
    %c0_38 = arith.constant 0 : index
    %58 = vector.load %arg4[%c0_36, %c3, %c0_37, %c0_38] : memref<1x4x8x8xf32, #tpu.memory_space<vmem>>, vector<1x1x8x8xf32>
    %59 = vector.shape_cast %58 : vector<1x1x8x8xf32> to vector<8x8xf32>
    %c0_39 = arith.constant 0 : index
    %c3_40 = arith.constant 3 : index
    %c0_41 = arith.constant 0 : index
    %c0_42 = arith.constant 0 : index
    %60 = vector.load %arg5[%c0_39, %c3_40, %c0_41, %c0_42] : memref<1x4x8x8xf32, #tpu.memory_space<vmem>>, vector<1x1x8x8xf32>
    %61 = vector.shape_cast %60 : vector<1x1x8x8xf32> to vector<8x8xf32>
    %c3_43 = arith.constant 3 : index
    %c0_44 = arith.constant 0 : index
    %62 = memref.load %arg2[%c3_43, %c0_44] : memref<4x2xf32, #tpu.memory_space<smem>>
    %c3_45 = arith.constant 3 : index
    %c1_46 = arith.constant 1 : index
    %63 = memref.load %arg2[%c3_45, %c1_46] : memref<4x2xf32, #tpu.memory_space<smem>>
    %64 = vector.broadcast %62 : f32 to vector<8x8xf32>
    %65 = arith.mulf %59, %64 : vector<8x8xf32>
    %66 = arith.addf %48, %65 : vector<8x8xf32>
    %67 = vector.broadcast %63 : f32 to vector<8x8xf32>
    %68 = arith.mulf %59, %67 : vector<8x8xf32>
    %69 = arith.addf %51, %68 : vector<8x8xf32>
    %70 = vector.broadcast %62 : f32 to vector<8x8xf32>
    %71 = arith.mulf %61, %70 : vector<8x8xf32>
    %72 = arith.addf %54, %71 : vector<8x8xf32>
    %73 = vector.broadcast %63 : f32 to vector<8x8xf32>
    %74 = arith.mulf %61, %73 : vector<8x8xf32>
    %75 = arith.addf %57, %74 : vector<8x8xf32>
    %c0_47 = arith.constant 0 : index
    %76 = memref.load %arg3[%c0_47] : memref<2xf32, #tpu.memory_space<smem>>
    %77 = tpu.transpose %72, [1, 0] : vector<8x8xf32> -> vector<8x8xf32>
    %78 = arith.addf %66, %77 : vector<8x8xf32>
    %cst_48 = arith.constant 5.000000e-01 : f32
    %79 = vector.broadcast %cst_48 : f32 to vector<8x8xf32>
    %80 = arith.mulf %79, %78 : vector<8x8xf32>
    %81 = vector.broadcast %76 : f32 to vector<8x8xf32>
    %82 = arith.addf %81, %80 : vector<8x8xf32>
    %c0_49 = arith.constant 0 : index
    %c0_50 = arith.constant 0 : index
    %c0_51 = arith.constant 0 : index
    %c0_52 = arith.constant 0 : index
    %83 = vector.load %arg6[%c0_49, %c0_50, %c0_51, %c0_52] : memref<1x2x8x8xf32, #tpu.memory_space<vmem>>, vector<1x1x8x8xf32>
    %84 = vector.shape_cast %83 : vector<1x1x8x8xf32> to vector<8x8xf32>
    %85 = vector.shape_cast %82 : vector<8x8xf32> to vector<1x1x8x8xf32>
    tpu.vector_store %arg6[%c0_49, %c0_50, %c0_51, %c0_52], %85 {strides = array<i32>} : memref<1x2x8x8xf32, #tpu.memory_space<vmem>>, vector<1x1x8x8xf32>,
    %c1_53 = arith.constant 1 : index
    %86 = memref.load %arg3[%c1_53] : memref<2xf32, #tpu.memory_space<smem>>
    %87 = tpu.transpose %75, [1, 0] : vector<8x8xf32> -> vector<8x8xf32>
    %88 = arith.addf %69, %87 : vector<8x8xf32>
    %cst_54 = arith.constant 5.000000e-01 : f32
    %89 = vector.broadcast %cst_54 : f32 to vector<8x8xf32>
    %90 = arith.mulf %89, %88 : vector<8x8xf32>
    %91 = vector.broadcast %86 : f32 to vector<8x8xf32>
    %92 = arith.addf %91, %90 : vector<8x8xf32>
    %c0_55 = arith.constant 0 : index
    %c1_56 = arith.constant 1 : index
    %c0_57 = arith.constant 0 : index
    %c0_58 = arith.constant 0 : index
    %93 = vector.load %arg6[%c0_55, %c1_56, %c0_57, %c0_58] : memref<1x2x8x8xf32, #tpu.memory_space<vmem>>, vector<1x1x8x8xf32>
    %94 = vector.shape_cast %93 : vector<1x1x8x8xf32> to vector<8x8xf32>
    %95 = vector.shape_cast %92 : vector<8x8xf32> to vector<1x1x8x8xf32>
    tpu.vector_store %arg6[%c0_55, %c1_56, %c0_57, %c0_58], %95 {strides = array<i32>} : memref<1x2x8x8xf32, #tpu.memory_space<vmem>>, vector<1x1x8x8xf32>,
    return
  }
  func.func @transform_0(%arg0: i32, %arg1: i32) -> (i32, i32) {
    %c0_i32 = arith.constant 0 : i32
    %c0_i32_0 = arith.constant 0 : i32
    %c0_i32_1 = arith.constant 0 : i32
    return %c0_i32, %c0_i32_0 : i32, i32
  }
  func.func @transform_1(%arg0: i32, %arg1: i32) -> i32 {
    %c0_i32 = arith.constant 0 : i32
    %c0_i32_0 = arith.constant 0 : i32
    return %c0_i32 : i32
  }
  func.func @transform_2(%arg0: i32, %arg1: i32) -> (i32, i32, i32, i32) {
    %c0_i32 = arith.constant 0 : i32
    %c0_i32_0 = arith.constant 0 : i32
    %c0_i32_1 = arith.constant 0 : i32
    return %arg0, %c0_i32, %arg1, %c0_i32_0 : i32, i32, i32, i32
  }
  func.func @transform_3(%arg0: i32, %arg1: i32) -> (i32, i32, i32, i32) {
    %c0_i32 = arith.constant 0 : i32
    %c0_i32_0 = arith.constant 0 : i32
    %c0_i32_1 = arith.constant 0 : i32
    return %arg0, %c0_i32, %c0_i32_0, %arg1 : i32, i32, i32, i32
  }
  func.func @transform_4(%arg0: i32, %arg1: i32) -> (i32, i32, i32, i32) {
    %c0_i32 = arith.constant 0 : i32
    %c0_i32_0 = arith.constant 0 : i32
    %c0_i32_1 = arith.constant 0 : i32
    return %arg0, %c0_i32, %arg1, %c0_i32_0 : i32, i32, i32, i32
  }
}

</mosaic_0001>

<llo_original>
// kernel: tpu_custom_call.1
$region0: #{tpu_custom_call.1}
  #allocation0 [shape = 'u32[]', space=smem, size = 0x4, offset = 0x4, fixed_abs, tag = 'smem constant byte address 0x4 - core index']
  #allocation1 [shape = 'u32[144,128]{1,0:T(1,128)}', space=vmem, size = 0x12000, scoped, tag = 'internal scratch']
  %s0 = inlined_call_operand.vmem [shape: f32[4,2], index: 0, kind: input, shape index: {}]
  %s1 = inlined_call_operand.vmem [shape: f32[2], index: 1, kind: input, shape index: {}]
  %s2 = inlined_call_operand.hbm [shape: f32[2,4,8,8], index: 2, kind: input, shape index: {}]
  %s3 = inlined_call_operand.hbm [shape: f32[2,4,8,8], index: 3, kind: input, shape index: {}]
  %s4 = inlined_call_operand.hbm [shape: f32[2,2,8,8], index: 4, kind: output, shape index: {}]
  %s5 = sld [smem:[#allocation0]]
  $region65: #{tpu_custom_call.1} parent=0
    _
  %s7 = ssub.s32 1, %s5
  %s8 = scalar_select 0, %s7, %s5
  $region1: #{tpu_custom_call.1} parent=0
    #allocation2 [shape = 'u8[2048]{0}', space=smem, size = 0x800, scoped, tag = 'input window, operand 0, single buffered']
    #allocation3 [shape = 's32[2]{0}', space=sflag, size = 0x8, scoped, tag = 'scoped memory for tpu_custom_call.1']
    #allocation4 [shape = 's32[2]{0}', space=sflag, size = 0x8, scoped, tag = 'scoped memory for tpu_custom_call.1']
    #allocation5 [shape = 's32[2]{0}', space=sflag, size = 0x8, scoped, tag = 'scoped memory for tpu_custom_call.1']
    #allocation6 [shape = 'u8[512]{0}', space=smem, size = 0x200, scoped, tag = 'input window, operand 1, single buffered']
    #allocation7 [shape = 's32[1]{0}', space=sflag, size = 0x4, scoped, tag = 'scoped memory for tpu_custom_call.1']
    #allocation8 [shape = 'u8[32768]{0}', space=vmem, size = 0x8000, scoped, tag = 'input window, operand 2']
    #allocation9 [shape = 'u8[32768]{0}', space=vmem, size = 0x8000, scoped, tag = 'input window, operand 3']
    #allocation10 [shape = 's32[2]{0}', space=sflag, size = 0x8, scoped, tag = 'scoped memory for tpu_custom_call.1']
    #allocation11 [shape = 'u8[16384]{0}', space=vmem, size = 0x4000, scoped, tag = 'output window, operand 0']
    %9 = vsyncpa [#allocation5], 0
    %10 = vsyncpa [#allocation7], 0
    %11 = vsyncpa [#allocation3], 0
    %s12 = scalar_lea.sflag [#allocation3], 1
    %13 = vsyncpa %s12, 0
    %14 = vsyncpa [#allocation10], 0
    %s15 = scalar_lea.sflag [#allocation10], 1
    %16 = vsyncpa %s15, 0
    %17 = vsyncpa [#allocation4], 0
    %s18 = scalar_lea.sflag [#allocation4], 1
    %19 = vsyncpa %s18, 0
    loop: start=0, step=1, limit=4
    $region2: #{tpu_custom_call.1} parent=1 // loop_pre_header
      _
    $region3: #{tpu_custom_call.1} parent=1 // loop_header
      %s21 = sphi 0, %s25
      %p22 = scmp.ge.s32.totalorder %s21, 4
      %s28 = sphi 0, %s40
      %s29 = sphi 0, %s36
      %s30 = sphi 0, %s28
      %s31 = sphi 0, %s29
      %s32 = sphi 0, %s30
      %s33 = sphi 0, %s31
      %s41 = sphi 0, %s41
      %s43 = sphi 0, %s41
      %s44 = sphi 0, %s43
      %s58 = sphi 0, %s44
      %s62 = sphi 0, %s62
      %s64 = sphi 0, %s62
      %s65 = sphi 0, %s64
      %s79 = sphi 0, %s65
      %s87 = sphi 0, %s89
      %s90 = sphi 0, %s87
      %s91 = sphi 0, %s90
      %s107 = sphi 0, %s91
      %s115 = sphi 0, %s117
      %s118 = sphi 0, %s115
      %s119 = sphi 0, %s118
      %s135 = sphi 0, %s119
      %s143 = sphi 0, %s145
      %s146 = sphi 0, %s143
      %s147 = sphi 0, %s146
      %s163 = sphi 0, %s147
    $region4: #{tpu_custom_call.1} parent=1 // loop_header_branch
      %24 = sbr.rel (%p22) target = $region8
    $region5: #{tpu_custom_call.1} parent=1 // loop_body
      %s26 = ssub.s32 %s21, 1
      %s27 = ssub.s32 %s21, 2
      %s34 = sadd.s32 1, %s29
      %p35 = scmp.ge.s32.totalorder %s34, 1
      %s36 = scalar_select %p35, 0, %s34
      %s37 = sadd.s32 1, %s28
      %s38 = scalar_select %p35, %s37, %s28
      %p39 = scmp.ge.s32.totalorder %s38, 2
      %s40 = scalar_select %p39, 0, %s38
      %s42 = sadd.s32 %s41, 1
      %p45 = scmp.eq.s32.totalorder %s21, 1
      %p46 = scmp.ne.s32.totalorder %s41, %s43
      %p47 = scmp.eq.s32.totalorder %s21, 0
      %p48 = por %p46, %p47
      %p49 = scmp.ne.s32.totalorder %s41, %s43
      %p50 = scmp.eq.s32.totalorder %s26, 1
      %p51 = por %p49, %p50
      %p52 = scmp.ne.s32.totalorder %s43, %s44
      %p53 = scmp.eq.s32.totalorder %s26, 0
      %p54 = por %p52, %p53
      %p55 = scmp.ne.s32.totalorder %s43, %s44
      %p56 = scmp.eq.s32.totalorder %s27, 1
      %p57 = por %p55, %p56
      %p59 = scmp.ne.s32.totalorder %s44, %s58
      %p60 = scmp.eq.s32.totalorder %s27, 0
      %p61 = por %p59, %p60
      %s63 = sadd.s32 %s62, 1
      %p66 = scmp.eq.s32.totalorder %s21, 1
      %p67 = scmp.ne.s32.totalorder %s62, %s64
      %p68 = scmp.eq.s32.totalorder %s21, 0
      %p69 = por %p67, %p68
      %p70 = scmp.ne.s32.totalorder %s62, %s64
      %p71 = scmp.eq.s32.totalorder %s26, 1
      %p72 = por %p70, %p71
      %p73 = scmp.ne.s32.totalorder %s64, %s65
      %p74 = scmp.eq.s32.totalorder %s26, 0
      %p75 = por %p73, %p74
      %p76 = scmp.ne.s32.totalorder %s64, %s65
      %p77 = scmp.eq.s32.totalorder %s27, 1
      %p78 = por %p76, %p77
      %p80 = scmp.ne.s32.totalorder %s65, %s79
      %p81 = scmp.eq.s32.totalorder %s27, 0
      %p82 = por %p80, %p81
      %s83 = ssub.s32 %s28, %s40
      %s84 = ssub.s32 %s29, %s36
      %s85 = sor.u32 %s83, %s84
      %p86 = scmp.eq.s32.totalorder %s85, 0
      %s88 = sadd.s32 %s87, 1
      %s89 = scalar_select %p86, %s87, %s88
      %p92 = pneg %p86
      %p93 = scmp.eq.s32.totalorder %s21, 1
      %p94 = por %p92, %p93
      %p95 = scmp.ne.s32.totalorder %s87, %s90
      %p96 = scmp.eq.s32.totalorder %s21, 0
      %p97 = por %p95, %p96
      %p98 = scmp.ne.s32.totalorder %s87, %s90
      %p99 = scmp.eq.s32.totalorder %s26, 1
      %p100 = por %p98, %p99
      %p101 = scmp.ne.s32.totalorder %s90, %s91
      %p102 = scmp.eq.s32.totalorder %s26, 0
      %p103 = por %p101, %p102
      %p104 = scmp.ne.s32.totalorder %s90, %s91
      %p105 = scmp.eq.s32.totalorder %s27, 1
      %p106 = por %p104, %p105
      %p108 = scmp.ne.s32.totalorder %s91, %s107
      %p109 = scmp.eq.s32.totalorder %s27, 0
      %p110 = por %p108, %p109
      %s111 = ssub.s32 %s28, %s40
      %s112 = ssub.s32 %s29, %s36
      %s113 = sor.u32 %s111, %s112
      %p114 = scmp.eq.s32.totalorder %s113, 0
      %s116 = sadd.s32 %s115, 1
      %s117 = scalar_select %p114, %s115, %s116
      %p120 = pneg %p114
      %p121 = scmp.eq.s32.totalorder %s21, 1
      %p122 = por %p120, %p121
      %p123 = scmp.ne.s32.totalorder %s115, %s118
      %p124 = scmp.eq.s32.totalorder %s21, 0
      %p125 = por %p123, %p124
      %p126 = scmp.ne.s32.totalorder %s115, %s118
      %p127 = scmp.eq.s32.totalorder %s26, 1
      %p128 = por %p126, %p127
      %p129 = scmp.ne.s32.totalorder %s118, %s119
      %p130 = scmp.eq.s32.totalorder %s26, 0
      %p131 = por %p129, %p130
      %p132 = scmp.ne.s32.totalorder %s118, %s119
      %p133 = scmp.eq.s32.totalorder %s27, 1
      %p134 = por %p132, %p133
      %p136 = scmp.ne.s32.totalorder %s119, %s135
      %p137 = scmp.eq.s32.totalorder %s27, 0
      %p138 = por %p136, %p137
      %s139 = ssub.s32 %s28, %s40
      %s140 = ssub.s32 %s29, %s36
      %s141 = sor.u32 %s139, %s140
      %p142 = scmp.eq.s32.totalorder %s141, 0
      %s144 = sadd.s32 %s143, 1
      %s145 = scalar_select %p142, %s143, %s144
      %p148 = pneg %p142
      %p149 = scmp.eq.s32.totalorder %s21, 1
      %p150 = por %p148, %p149
      %p151 = scmp.ne.s32.totalorder %s143, %s146
      %p152 = scmp.eq.s32.totalorder %s21, 0
      %p153 = por %p151, %p152
      %p154 = scmp.ne.s32.totalorder %s143, %s146
      %p155 = scmp.eq.s32.totalorder %s26, 1
      %p156 = por %p154, %p155
      %p157 = scmp.ne.s32.totalorder %s146, %s147
      %p158 = scmp.eq.s32.totalorder %s26, 0
      %p159 = por %p157, %p158
      %p160 = scmp.ne.s32.totalorder %s146, %s147
      %p161 = scmp.eq.s32.totalorder %s27, 1
      %p162 = por %p160, %p161
      %p164 = scmp.ne.s32.totalorder %s147, %s163
      %p165 = scmp.eq.s32.totalorder %s27, 0
      %p166 = por %p164, %p165
      %p167 = scmp.le.s32.totalorder 1, %s21
      %p168 = scmp.lt.s32.totalorder %s21, 3
      %p169 = pnand %p167, %p168
      %p170 = pneg %p169
      // Predicated region
      $region9: #{tpu_custom_call.1} parent=5 // pred_check
        _
      $region10: #{tpu_custom_call.1} parent=5 // pred_check_branch
        %172 = sbr.rel (%p169) target = $region12
      $region11: #{tpu_custom_call.1} parent=5 // pred_region
        %s173 = ssub.s32 %s21, 1
        // Predicated region
        $region13: #{tpu_custom_call.1} parent=11 // pred_check
          %p174 = pneg %p54
        $region14: #{tpu_custom_call.1} parent=11 // pred_check_branch
          %176 = sbr.rel (%p174) target = $region16
        $region15: #{tpu_custom_call.1} parent=11 // pred_region
          %s178 = ssub.s32 64, 64
          %179 = vsyncadd [#allocation5], %s178
          %s181 = sshll.u32 %s0, 4
          %s182 = int_to_ptr.vmem [resolvable:$true] %s181
          %184 = dma.vmem_to_smem %s182, 64, [#allocation2], [#allocation5]
        $region16: #{tpu_custom_call.1} parent=11 // pred_fallthru
          _
        // Predicated region
        $region17: #{tpu_custom_call.1} parent=11 // pred_check
          %p185 = pneg %p75
        $region18: #{tpu_custom_call.1} parent=11 // pred_check_branch
          %187 = sbr.rel (%p185) target = $region20
        $region19: #{tpu_custom_call.1} parent=11 // pred_region
          %s189 = ssub.s32 16, 16
          %190 = vsyncadd [#allocation7], %s189
          %s192 = sshll.u32 %s1, 4
          %s193 = int_to_ptr.vmem [resolvable:$true] %s192
          %195 = dma.vmem_to_smem %s193, 16, [#allocation6], [#allocation7]
        $region20: #{tpu_custom_call.1} parent=11 // pred_fallthru
          _
      $region12: #{tpu_custom_call.1} parent=5 // pred_fallthru
        _
      %p196 = scmp.lt.s32.totalorder %s21, 2
      // Predicated region
      $region21: #{tpu_custom_call.1} parent=5 // pred_check
        %p197 = pneg %p196
      $region22: #{tpu_custom_call.1} parent=5 // pred_check_branch
        %199 = sbr.rel (%p197) target = $region24
      $region23: #{tpu_custom_call.1} parent=5 // pred_region
        // Predicated region
        $region25: #{tpu_custom_call.1} parent=23 // pred_check
          %p200 = pneg %p97
        $region26: #{tpu_custom_call.1} parent=23 // pred_check_branch
          %202 = sbr.rel (%p200) target = $region28
        $region27: #{tpu_custom_call.1} parent=23 // pred_region
          %s203 = sand.u32 %s87, 1
          %s204 = scalar_lea.sflag [#allocation3], %s203
          %s205 = sand.u32 %s87, 1
          %s206 = smul.addr %s205, 32
          %s207 = scalar_lea.vmem [#allocation8], %s206
          %s209 = ssub.s32 512, 512
          %210 = vsyncadd %s204, %s209
          %s211 = smul.addr %s28, 4
          %s212 = sadd.s32 %s29, %s211
          %s213 = smul.addr %s212, 128
          %s214 = scalar_lea.hbm %s2, %s213
          %s215 = sshll.u32 %s207, 4
          %s216 = int_to_ptr.vmem [resolvable:$true] %s215
          %221 = dma.hbm_to_vmem [thread:$0]  %s214, 512, %s216, %s204, 128, 128, 8
        $region28: #{tpu_custom_call.1} parent=23 // pred_fallthru
          _
        // Predicated region
        $region29: #{tpu_custom_call.1} parent=23 // pred_check
          %p222 = pneg %p125
        $region30: #{tpu_custom_call.1} parent=23 // pred_check_branch
          %224 = sbr.rel (%p222) target = $region32
        $region31: #{tpu_custom_call.1} parent=23 // pred_region
          %s225 = sand.u32 %s115, 1
          %s226 = scalar_lea.sflag [#allocation10], %s225
          %s227 = sand.u32 %s115, 1
          %s228 = smul.addr %s227, 32
          %s229 = scalar_lea.vmem [#allocation9], %s228
          %s231 = ssub.s32 512, 512
          %232 = vsyncadd %s226, %s231
          %s233 = smul.addr %s28, 4
          %s234 = sadd.s32 %s29, %s233
          %s235 = smul.addr %s234, 128
          %s236 = scalar_lea.hbm %s3, %s235
          %s237 = sshll.u32 %s229, 4
          %s238 = int_to_ptr.vmem [resolvable:$true] %s237
          %243 = dma.hbm_to_vmem [thread:$0]  %s236, 512, %s238, %s226, 128, 128, 8
        $region32: #{tpu_custom_call.1} parent=23 // pred_fallthru
          _
      $region24: #{tpu_custom_call.1} parent=5 // pred_fallthru
        _
      %p244 = scmp.le.s32.totalorder 1, %s21
      %p245 = scmp.lt.s32.totalorder %s21, 3
      %p246 = pnand %p244, %p245
      %p247 = pneg %p246
      // Predicated region
      $region33: #{tpu_custom_call.1} parent=5 // pred_check
        _
      $region34: #{tpu_custom_call.1} parent=5 // pred_check_branch
        %249 = sbr.rel (%p246) target = $region36
      $region35: #{tpu_custom_call.1} parent=5 // pred_region
        %s250 = ssub.s32 %s21, 1
        // Predicated region
        $region37: #{tpu_custom_call.1} parent=35 // pred_check
          %p251 = pneg %p54
        $region38: #{tpu_custom_call.1} parent=35 // pred_check_branch
          %253 = sbr.rel (%p251) target = $region40
        $region39: #{tpu_custom_call.1} parent=35 // pred_region
          %254 = dma.done [#allocation5], 64
        $region40: #{tpu_custom_call.1} parent=35 // pred_fallthru
          _
        // Predicated region
        $region41: #{tpu_custom_call.1} parent=35 // pred_check
          %p255 = pneg %p75
        $region42: #{tpu_custom_call.1} parent=35 // pred_check_branch
          %257 = sbr.rel (%p255) target = $region44
        $region43: #{tpu_custom_call.1} parent=35 // pred_region
          %258 = dma.done [#allocation7], 16
        $region44: #{tpu_custom_call.1} parent=35 // pred_fallthru
          _
        %s259 = sand.u32 %s90, 1
        %s260 = scalar_lea.sflag [#allocation3], %s259
        %s261 = sand.u32 %s90, 1
        %s262 = smul.addr %s261, 32
        %s263 = scalar_lea.vmem [#allocation8], %s262
        // Predicated region
        $region45: #{tpu_custom_call.1} parent=35 // pred_check
          %p264 = pneg %p103
        $region46: #{tpu_custom_call.1} parent=35 // pred_check_branch
          %266 = sbr.rel (%p264) target = $region48
        $region47: #{tpu_custom_call.1} parent=35 // pred_region
          %267 = dma.done %s260, 512
        $region48: #{tpu_custom_call.1} parent=35 // pred_fallthru
          _
        %s268 = sand.u32 %s118, 1
        %s269 = scalar_lea.sflag [#allocation10], %s268
        %s270 = sand.u32 %s118, 1
        %s271 = smul.addr %s270, 32
        %s272 = scalar_lea.vmem [#allocation9], %s271
        // Predicated region
        $region49: #{tpu_custom_call.1} parent=35 // pred_check
          %p273 = pneg %p131
        $region50: #{tpu_custom_call.1} parent=35 // pred_check_branch
          %275 = sbr.rel (%p273) target = $region52
        $region51: #{tpu_custom_call.1} parent=35 // pred_region
          %276 = dma.done %s269, 512
        $region52: #{tpu_custom_call.1} parent=35 // pred_fallthru
          _
        %277 = sfence
        %p278 = pneg %p54
        %p279 = pneg %p51
        %p280 = pneg %p75
        %p281 = pneg %p72
        %s282 = sand.u32 %s90, 1
        %s283 = scalar_lea.sflag [#allocation3], %s282
        %s284 = sand.u32 %s90, 1
        %s285 = smul.addr %s284, 32
        %s286 = scalar_lea.vmem [#allocation8], %s285
        %p287 = pneg %p103
        %p288 = pneg %p100
        %s289 = sand.u32 %s118, 1
        %s290 = scalar_lea.sflag [#allocation10], %s289
        %s291 = sand.u32 %s118, 1
        %s292 = smul.addr %s291, 32
        %s293 = scalar_lea.vmem [#allocation9], %s292
        %p294 = pneg %p131
        %p295 = pneg %p128
        %p296 = pneg %p159
        %p297 = pneg %p156
        %s298 = sand.u32 %s146, 1
        %s299 = scalar_lea.sflag [#allocation4], %s298
        %s300 = sand.u32 %s146, 1
        %s301 = smul.addr %s300, 16
        %s302 = scalar_lea.vmem [#allocation11], %s301
        %v303 = vld [vmem:[%s263] sm:$0xff]
        %v304 = vld [vmem:[%s272] sm:$0xff]
        %s305 = sld [smem:[#allocation2]]
        %s306 = sld [smem:[#allocation2 + $0x1]]
        %v307 = vstv %s305
        %v308 = vmul.f32 %v303, %v307
        %v309 = vadd.f32 %v308, 0.0
        %v310 = vstv %s306
        %v311 = vmul.f32 %v303, %v310
        %v312 = vadd.f32 %v311, 0.0
        %v313 = vmul.f32 %v304, %v307
        %v314 = vadd.f32 %v313, 0.0
        %v315 = vmul.f32 %v304, %v310
        %v316 = vadd.f32 %v315, 0.0
        %s317 = scalar_lea.vmem %s263, 8 [#allocation8]
        %v318 = vld [vmem:[%s317] sm:$0xff]
        %s319 = scalar_lea.vmem %s272, 8 [#allocation9]
        %v320 = vld [vmem:[%s319] sm:$0xff]
        %s321 = sld [smem:[#allocation2 + $0x80]]
        %s322 = sld [smem:[#allocation2 + $0x81]]
        %v323 = vstv %s321
        %v324 = vmul.f32 %v318, %v323
        %v325 = vadd.f32 %v309, %v324
        %v326 = vstv %s322
        %v327 = vmul.f32 %v318, %v326
        %v328 = vadd.f32 %v312, %v327
        %v329 = vmul.f32 %v320, %v323
        %v330 = vadd.f32 %v314, %v329
        %v331 = vmul.f32 %v320, %v326
        %v332 = vadd.f32 %v316, %v331
        %s333 = scalar_lea.vmem %s263, 16 [#allocation8]
        %v334 = vld [vmem:[%s333] sm:$0xff]
        %s335 = scalar_lea.vmem %s272, 16 [#allocation9]
        %v336 = vld [vmem:[%s335] sm:$0xff]
        %s337 = sld [smem:[#allocation2 + $0x100]]
        %s338 = sld [smem:[#allocation2 + $0x101]]
        %v339 = vstv %s337
        %v340 = vmul.f32 %v334, %v339
        %v341 = vadd.f32 %v325, %v340
        %v342 = vstv %s338
        %v343 = vmul.f32 %v334, %v342
        %v344 = vadd.f32 %v328, %v343
        %v345 = vmul.f32 %v336, %v339
        %v346 = vadd.f32 %v330, %v345
        %v347 = vmul.f32 %v336, %v342
        %v348 = vadd.f32 %v332, %v347
        %s349 = scalar_lea.vmem %s263, 24 [#allocation8]
        %v350 = vld [vmem:[%s349] sm:$0xff]
        %s351 = scalar_lea.vmem %s272, 24 [#allocation9]
        %v352 = vld [vmem:[%s351] sm:$0xff]
        %s353 = sld [smem:[#allocation2 + $0x180]]
        %s354 = sld [smem:[#allocation2 + $0x181]]
        %v355 = vstv %s353
        %v356 = vmul.f32 %v350, %v355
        %v357 = vadd.f32 %v341, %v356
        %v358 = vstv %s354
        %v359 = vmul.f32 %v350, %v358
        %v360 = vadd.f32 %v344, %v359
        %v361 = vmul.f32 %v352, %v355
        %v362 = vadd.f32 %v346, %v361
        %v363 = vmul.f32 %v352, %v358
        %v364 = vadd.f32 %v348, %v363
        %s365 = sld [smem:[#allocation6]]
        %366 = vxpose.xlu0.b32.start [1/16] %v362, 128
        %367 = vxpose.xlu0.b32.cont [2/16] 0.0, 128
        %368 = vxpose.xlu0.b32.cont [3/16] 0.0, 128
        %369 = vxpose.xlu0.b32.cont [4/16] 0.0, 128
        %370 = vxpose.xlu0.b32.cont [5/16] 0.0, 128
        %371 = vxpose.xlu0.b32.cont [6/16] 0.0, 128
        %372 = vxpose.xlu0.b32.cont [7/16] 0.0, 128
        %373 = vxpose.xlu0.b32.cont [8/16] 0.0, 128
        %374 = vxpose.xlu0.b32.cont [9/16] 0.0, 128
        %375 = vxpose.xlu0.b32.cont [10/16] 0.0, 128
        %376 = vxpose.xlu0.b32.cont [11/16] 0.0, 128
        %377 = vxpose.xlu0.b32.cont [12/16] 0.0, 128
        %378 = vxpose.xlu0.b32.cont [13/16] 0.0, 128
        %379 = vxpose.xlu0.b32.cont [14/16] 0.0, 128
        %380 = vxpose.xlu0.b32.cont [15/16] 0.0, 128
        %381 = vxpose.xlu0.b32.end [16/16] 0.0, 128
        %v382 = vpop.trf.xlu0
        %v383 = vpop.trf.xlu0
        %v384 = vpop.trf.xlu0
        %v385 = vpop.trf.xlu0
        %v386 = vpop.trf.xlu0
        %v387 = vpop.trf.xlu0
        %v388 = vpop.trf.xlu0
        %v389 = vpop.trf.xlu0
        %v390 = vpop.trf.xlu0
        %v391 = vpop.trf.xlu0
        %v392 = vpop.trf.xlu0
        %v393 = vpop.trf.xlu0
        %v394 = vpop.trf.xlu0
        %v395 = vpop.trf.xlu0
        %v396 = vpop.trf.xlu0
        %v397 = vpop.trf.xlu0
        %v398 = vadd.f32 %v357, %v382
        %v399 = vmul.f32 %v398, 0.5
        %v400 = vstv %s365
        %v401 = vadd.f32 %v400, %v399
        %vm402 = vcmask 64512
        %403 = vst.msk [vmem:[%s302] sm:$0xff] %vm402, %v401
        %s404 = sld [smem:[#allocation6 + $0x1]]
        %405 = vxpose.xlu0.b32.start [1/16] %v364, 128
        %406 = vxpose.xlu0.b32.cont [2/16] 0.0, 128
        %407 = vxpose.xlu0.b32.cont [3/16] 0.0, 128
        %408 = vxpose.xlu0.b32.cont [4/16] 0.0, 128
        %409 = vxpose.xlu0.b32.cont [5/16] 0.0, 128
        %410 = vxpose.xlu0.b32.cont [6/16] 0.0, 128
        %411 = vxpose.xlu0.b32.cont [7/16] 0.0, 128
        %412 = vxpose.xlu0.b32.cont [8/16] 0.0, 128
        %413 = vxpose.xlu0.b32.cont [9/16] 0.0, 128
        %414 = vxpose.xlu0.b32.cont [10/16] 0.0, 128
        %415 = vxpose.xlu0.b32.cont [11/16] 0.0, 128
        %416 = vxpose.xlu0.b32.cont [12/16] 0.0, 128
        %417 = vxpose.xlu0.b32.cont [13/16] 0.0, 128
        %418 = vxpose.xlu0.b32.cont [14/16] 0.0, 128
        %419 = vxpose.xlu0.b32.cont [15/16] 0.0, 128
        %420 = vxpose.xlu0.b32.end [16/16] 0.0, 128
        %v421 = vpop.trf.xlu0
        %v422 = vpop.trf.xlu0
        %v423 = vpop.trf.xlu0
        %v424 = vpop.trf.xlu0
        %v425 = vpop.trf.xlu0
        %v426 = vpop.trf.xlu0
        %v427 = vpop.trf.xlu0
        %v428 = vpop.trf.xlu0
        %v429 = vpop.trf.xlu0
        %v430 = vpop.trf.xlu0
        %v431 = vpop.trf.xlu0
        %v432 = vpop.trf.xlu0
        %v433 = vpop.trf.xlu0
        %v434 = vpop.trf.xlu0
        %v435 = vpop.trf.xlu0
        %v436 = vpop.trf.xlu0
        %v437 = vadd.f32 %v360, %v421
        %v438 = vmul.f32 %v437, 0.5
        %v439 = vstv %s404
        %v440 = vadd.f32 %v439, %v438
        %s441 = scalar_lea.vmem %s302, 8 [#allocation11]
        %442 = vst.msk [vmem:[%s441] sm:$0xff] %vm402, %v440
        %s443 = sand.u32 %s146, 1
        %s444 = scalar_lea.sflag [#allocation4], %s443
        %s445 = sand.u32 %s146, 1
        %s446 = smul.addr %s445, 16
        %s447 = scalar_lea.vmem [#allocation11], %s446
        // Predicated region
        $region53: #{tpu_custom_call.1} parent=35 // pred_check
          %p448 = pneg %p156
        $region54: #{tpu_custom_call.1} parent=35 // pred_check_branch
          %450 = sbr.rel (%p448) target = $region56
        $region55: #{tpu_custom_call.1} parent=35 // pred_region
          %s452 = ssub.s32 256, 256
          %453 = vsyncadd %s444, %s452
          %s454 = smul.addr %s30, 2
          %s455 = sadd.s32 %s31, %s454
          %s456 = smul.addr %s455, 128
          %s457 = scalar_lea.hbm %s4, %s456
          %s458 = sshll.u32 %s447, 4
          %s459 = int_to_ptr.vmem [resolvable:$true] %s458
          %464 = dma.vmem_to_hbm [thread:$0]  %s459, 256, %s457, %s444, 128, 128, 8
        $region56: #{tpu_custom_call.1} parent=35 // pred_fallthru
          _
      $region36: #{tpu_custom_call.1} parent=5 // pred_fallthru
        _
      %p465 = scmp.le.s32.totalorder 2, %s21
      // Predicated region
      $region57: #{tpu_custom_call.1} parent=5 // pred_check
        %p466 = pneg %p465
      $region58: #{tpu_custom_call.1} parent=5 // pred_check_branch
        %468 = sbr.rel (%p466) target = $region60
      $region59: #{tpu_custom_call.1} parent=5 // pred_region
        %s469 = ssub.s32 %s21, 2
        // Predicated region
        $region61: #{tpu_custom_call.1} parent=59 // pred_check
          %p470 = pneg %p162
        $region62: #{tpu_custom_call.1} parent=59 // pred_check_branch
          %472 = sbr.rel (%p470) target = $region64
        $region63: #{tpu_custom_call.1} parent=59 // pred_region
          %s473 = sand.u32 %s147, 1
          %s474 = scalar_lea.sflag [#allocation4], %s473
          %s475 = sand.u32 %s147, 1
          %s476 = smul.addr %s475, 16
          %s477 = scalar_lea.vmem [#allocation11], %s476
          %478 = dma.done %s474, 256
        $region64: #{tpu_custom_call.1} parent=59 // pred_fallthru
          _
      $region60: #{tpu_custom_call.1} parent=5 // pred_fallthru
        _
    $region6: #{tpu_custom_call.1} parent=1 // loop_footer
      %s25 = sadd.s32 1, %s21
    $region7: #{tpu_custom_call.1} parent=1 // loop_footer_branch
      %20 = sbr.rel target = $region3
    $region8: #{tpu_custom_call.1} parent=1 // loop_exit
      _
    %479 = vsyncpa [#allocation3], 1
    %s480 = scalar_lea.sflag [#allocation3], 1
    %481 = vsyncpa %s480, 1
    %482 = vsyncpa [#allocation10], 1
    %s483 = scalar_lea.sflag [#allocation10], 1
    %484 = vsyncpa %s483, 1
    %485 = vsyncpa [#allocation4], 1
    %s486 = scalar_lea.sflag [#allocation4], 1
    %487 = vsyncpa %s486, 1
    %488 = vsyncpa [#allocation5], 1
    %s489 = scalar_lea.sflag [#allocation5], 1
    %490 = vsyncpa %s489, 1
    %491 = vsyncpa [#allocation7], 1

</llo_original>
